<compile_context>
chip_gen: v7x
topology: tpu7x:2x2x1
jax: 0.10.0
libtpu: 0.0.40
codegen_flags: <defaults>
</compile_context>

<pallas_src>
from functools import partial

import numpy as np
import jax
import jax.numpy as jnp
from jax.experimental import pallas as pl
from jax.experimental.pallas import tpu as pltpu

C_IN = 64
C_OUT = 100
C_OUT_PAD = 128          # pad 100 -> 128 so the MXU N-pass and the stores are full-lane
L_IN = 16
L_OUT = 18
EPS = 1e-5


def _ce_proj_kernel(x_ref, gamma_ref, beta_ref, w_ref, o_ref):
    # x_ref:     (TB, 16, 64)   one batch block, positions in sublanes, channels lane-dense
    # gamma_ref: (1, 16, 64)    LayerNorm weight (per position), pre-broadcast over channels
    # beta_ref:  (1, 16, 64)    LayerNorm bias   (per position), pre-broadcast over channels
    # w_ref:     (64, 128)      Conv1d(1x1) weight^T, zero-padded 100 -> 128 output channels
    # o_ref:     (TB, 18, 128)  conv output with nearest-interp rows, padded channels
    x = x_ref[...]
    tb = x.shape[0]

    # --- LayerNorm over the 16 positions (sublane reduce/broadcast; biased var, eps=1e-5) ---
    mean = jnp.mean(x, axis=1, keepdims=True)                    # (TB, 1, 64)
    xc = x - mean
    var = jnp.mean(xc * xc, axis=1, keepdims=True)               # (TB, 1, 64)
    ln = xc * jax.lax.rsqrt(var + EPS) * gamma_ref[...] + beta_ref[...]

    # --- Conv1d(64 -> 100, k=1, no bias): contract over the true K=64 channel dim ---
    # (TB, 16, 64) -> (TB*16, 64) is a free reshape (16 % 8 == 0, lane dim unchanged).
    y = jnp.dot(ln.reshape(tb * L_IN, C_IN), w_ref[...],
                preferred_element_type=jnp.float32)              # (TB*16, 128)
    y = y.reshape(tb, L_IN, C_OUT_PAD)                           # (TB, 16, 128)

    # --- Nearest-neighbor interp 16 -> 18: src = floor(j*16/18) = [0,0,1..8,8,9..15] ---
    # Realized as store-time row duplication; every store is a full 128-lane vst.
    o_ref[:, 0:1, :] = y[:, 0:1, :]
    o_ref[:, 1:10, :] = y[:, 0:9, :]
    o_ref[:, 10:18, :] = y[:, 8:16, :]


def prepare_params(gamma, beta, w):
    """Build kernel-friendly parameter layouts ONCE (hoisted out of the hot path)."""
    w2 = jnp.asarray(w, jnp.float32).reshape(C_OUT, C_IN)                       # (100, 64)
    w_t = jnp.zeros((C_IN, C_OUT_PAD), jnp.float32).at[:, :C_OUT].set(w2.T)    # (64, 128)
    gamma_b = jnp.tile(jnp.asarray(gamma, jnp.float32).reshape(1, L_IN, 1), (1, 1, C_IN))
    beta_b = jnp.tile(jnp.asarray(beta, jnp.float32).reshape(1, L_IN, 1), (1, 1, C_IN))
    return w_t, gamma_b, beta_b


def _pick_tb(batch, block_b):
    """Pick a batch tile: >=2 grid steps for megacore (v7x), and divide B if possible."""
    target = max(1, min(block_b, -(-batch // 2)))      # aim for >= 2 grid steps
    best = 1
    for d in range(1, target + 1):
        if batch % d == 0:
            best = d
    # If the best exact divisor would explode the step count (e.g. prime B), pad instead.
    if batch // best > 4 * (-(-batch // target)):
        b_pad = -(-batch // target) * target
        return target, b_pad
    return best, batch


@partial(jax.jit, static_argnames=("block_b",))
def cross_entropy_projection(x, w_t, gamma_b, beta_b, *, block_b=256):
    """x: (B, 64, 16) f32 -> (B, 100, 18) f32.  Params from prepare_params()."""
    B = x.shape[0]
    assert x.shape == (B, C_IN, L_IN)
    tb, b_pad = _pick_tb(B, block_b)

    # Channel-lane-dense view: (B, 64, 16) -> (B, 16, 64)  (transpose done in the wrapper).
    xt = jnp.transpose(x.astype(jnp.float32), (0, 2, 1))
    if b_pad != B:
        xt = jnp.pad(xt, ((0, b_pad - B), (0, 0), (0, 0)))
    grid = (b_pad // tb,)

    # VMEM budget from actual tile bytes (portable to v7x's 64 MiB physical VMEM):
    # double-buffered x block + double-buffered out block (18 sublanes pad to 24/slab)
    # + ~40 KiB of constants + headroom for intermediates / Mosaic scratch.
    in_block = tb * L_IN * C_IN * 4
    out_block = tb * 24 * C_OUT_PAD * 4
    vmem_limit = max(8 << 20, min(2 * (in_block + out_block) + (2 << 20), 48 << 20))

    out = pl.pallas_call(
        _ce_proj_kernel,
        out_shape=jax.ShapeDtypeStruct((b_pad, L_OUT, C_OUT_PAD), jnp.float32),
        grid_spec=pltpu.PrefetchScalarGridSpec(
            num_scalar_prefetch=0,
            grid=grid,
            in_specs=[
                pl.BlockSpec((tb, L_IN, C_IN), lambda i: (i, 0, 0)),   # x (batch-blocked)
                # Constants below are tiny now (<= 32 KiB each), so the default
                # double-buffering costs ~40 KiB total -- negligible on all generations.
                pl.BlockSpec((1, L_IN, C_IN), lambda i: (0, 0, 0)),    # gamma
                pl.BlockSpec((1, L_IN, C_IN), lambda i: (0, 0, 0)),    # beta
                pl.BlockSpec((C_IN, C_OUT_PAD), lambda i: (0, 0)),     # conv weight^T (padded)
            ],
            out_specs=pl.BlockSpec((tb, L_OUT, C_OUT_PAD), lambda i: (i, 0, 0)),
        ),
        compiler_params=pltpu.CompilerParams(
            dimension_semantics=("parallel",),      # batch axis shards across v7x's 2 TCs
            vmem_limit_bytes=vmem_limit,
        ),
    )(xt, gamma_b, beta_b, w_t)

    # Slice the padded output channels and transpose (B, 18, 100) -> (B, 100, 18).
    return jnp.transpose(out[:B, :, :C_OUT], (0, 2, 1))


def _reference(x, gamma, beta, w):
    # Pure-JAX reference of the PyTorch forward (for sanity check).
    mean = jnp.mean(x, axis=-1, keepdims=True)
    var = jnp.mean((x - mean) ** 2, axis=-1, keepdims=True)
    ln = (x - mean) / jnp.sqrt(var + EPS) * gamma + beta                # (B, 64, 16)
    y = jnp.einsum("oc,bcl->bol", w.reshape(C_OUT, C_IN), ln,
                   precision=jax.lax.Precision.HIGHEST)                 # (B, 100, 16)
    idx = np.floor(np.arange(L_OUT) * (L_IN / L_OUT)).astype(np.int32)
    return y[..., idx]                                                  # (B, 100, 18)


if __name__ == "__main__":
    key = jax.random.PRNGKey(0)
    kx, kg, kb, kw, kx2 = jax.random.split(key, 5)

    # Deterministic synthetic parameters (shapes from the module's __init__).
    gamma = 1.0 + 0.1 * jax.random.normal(kg, (L_IN,), dtype=jnp.float32)   # LayerNorm.weight
    beta = 0.1 * jax.random.normal(kb, (L_IN,), dtype=jnp.float32)          # LayerNorm.bias
    w = jax.random.normal(kw, (C_OUT, C_IN, 1), dtype=jnp.float32) * (1.0 / np.sqrt(C_IN))

    params = prepare_params(gamma, beta, w)   # built once, reused across calls

    # Small shape implied by the module's forward: (B, 64, 16)
    B = 2
    x = jax.random.normal(kx, (B, C_IN, L_IN), dtype=jnp.float32)
    out = jax.block_until_ready(cross_entropy_projection(x, *params))
    ref = _reference(x, gamma, beta, w)
    assert out.shape == (B, C_OUT, L_OUT), out.shape
    np.testing.assert_allclose(np.asarray(out), np.asarray(ref), rtol=5e-5, atol=5e-5)

    # Also exercise a multi-step grid with a non-power-of-two batch (tb=5 divides 20).
    B2 = 20
    x2 = jax.random.normal(kx2, (B2, C_IN, L_IN), dtype=jnp.float32)
    out2 = jax.block_until_ready(cross_entropy_projection(x2, *params, block_b=8))
    ref2 = _reference(x2, gamma, beta, w)
    assert out2.shape == (B2, C_OUT, L_OUT), out2.shape
    np.testing.assert_allclose(np.asarray(out2), np.asarray(ref2), rtol=5e-5, atol=5e-5)

    print("KERNEL_OK")
</pallas_src>

<mosaic_0001>
module attributes {stable_mosaic.version = 11 : i64} {
  func.func @_ce_proj_kernel(%arg0: i32, %arg1: memref<1x16x64xf32, #tpu.memory_space<vmem>>, %arg2: memref<1x16x64xf32, #tpu.memory_space<vmem>>, %arg3: memref<1x16x64xf32, #tpu.memory_space<vmem>>, %arg4: memref<64x128xf32, #tpu.memory_space<vmem>>, %arg5: memref<1x18x128xf32, #tpu.memory_space<vmem>>) attributes {dimension_semantics = [#tpu.dimension_semantics<parallel>], iteration_bounds = array<i64: 2>, scalar_prefetch = 0 : i64, scratch_operands = 0 : i64, tpu.core_type = #tpu.core_type<tc>, window_params = [{transform_indices = @transform_0, window_bounds = array<i64: 1, 16, 64>}, {pipeline_mode = #tpu.pipeline_mode<synchronous>, transform_indices = @transform_1, window_bounds = array<i64: 1, 16, 64>}, {pipeline_mode = #tpu.pipeline_mode<synchronous>, transform_indices = @transform_2, window_bounds = array<i64: 1, 16, 64>}, {pipeline_mode = #tpu.pipeline_mode<synchronous>, transform_indices = @transform_3, window_bounds = array<i64: 64, 128>}, {transform_indices = @transform_4, window_bounds = array<i64: 1, 18, 128>}]} {
    %c0 = arith.constant 0 : index
    %c0_0 = arith.constant 0 : index
    %c0_1 = arith.constant 0 : index
    %0 = vector.load %arg1[%c0, %c0_0, %c0_1] : memref<1x16x64xf32, #tpu.memory_space<vmem>>, vector<1x16x64xf32>
    %cst = arith.constant dense<0.000000e+00> : vector<1x64xf32>
    %1 = vector.multi_reduction <add>, %0, %cst [1] : vector<1x16x64xf32> to vector<1x64xf32>
    %2 = vector.shape_cast %1 : vector<1x64xf32> to vector<1x1x64xf32>
    %cst_2 = arith.constant 1.600000e+01 : f32
    %3 = vector.broadcast %cst_2 : f32 to vector<1x1x64xf32>
    %4 = arith.divf %2, %3 : vector<1x1x64xf32>
    %5 = vector.broadcast %4 : vector<1x1x64xf32> to vector<1x16x64xf32>
    %6 = arith.subf %0, %5 : vector<1x16x64xf32>
    %7 = arith.mulf %6, %6 : vector<1x16x64xf32>
    %cst_3 = arith.constant dense<0.000000e+00> : vector<1x64xf32>
    %8 = vector.multi_reduction <add>, %7, %cst_3 [1] : vector<1x16x64xf32> to vector<1x64xf32>
    %9 = vector.shape_cast %8 : vector<1x64xf32> to vector<1x1x64xf32>
    %cst_4 = arith.constant 1.600000e+01 : f32
    %10 = vector.broadcast %cst_4 : f32 to vector<1x1x64xf32>
    %11 = arith.divf %9, %10 : vector<1x1x64xf32>
    %cst_5 = arith.constant 9.99999974E-6 : f32
    %12 = vector.broadcast %cst_5 : f32 to vector<1x1x64xf32>
    %13 = arith.addf %11, %12 : vector<1x1x64xf32>
    %14 = math.rsqrt %13 : vector<1x1x64xf32>
    %15 = vector.broadcast %14 : vector<1x1x64xf32> to vector<1x16x64xf32>
    %16 = arith.mulf %6, %15 : vector<1x16x64xf32>
    %c0_6 = arith.constant 0 : index
    %c0_7 = arith.constant 0 : index
    %c0_8 = arith.constant 0 : index
    %17 = vector.load %arg2[%c0_6, %c0_7, %c0_8] : memref<1x16x64xf32, #tpu.memory_space<vmem>>, vector<1x16x64xf32>
    %18 = arith.mulf %16, %17 : vector<1x16x64xf32>
    %c0_9 = arith.constant 0 : index
    %c0_10 = arith.constant 0 : index
    %c0_11 = arith.constant 0 : index
    %19 = vector.load %arg3[%c0_9, %c0_10, %c0_11] : memref<1x16x64xf32, #tpu.memory_space<vmem>>, vector<1x16x64xf32>
    %20 = arith.addf %18, %19 : vector<1x16x64xf32>
    %21 = vector.shape_cast %20 : vector<1x16x64xf32> to vector<16x64xf32>
    %c0_12 = arith.constant 0 : index
    %c0_13 = arith.constant 0 : index
    %22 = vector.load %arg4[%c0_12, %c0_13] : memref<64x128xf32, #tpu.memory_space<vmem>>, vector<64x128xf32>
    %cst_14 = arith.constant dense<0.000000e+00> : vector<16x128xf32>
    %23 = tpu.matmul %21, %22, %cst_14 {dimension_numbers = #tpu.dot_dimension_numbers<[1], [0], [0], [1], [0, 0, 1, 1], [], []>} : vector<16x64xf32>, vector<64x128xf32>, vector<16x128xf32> -> vector<16x128xf32>
    %24 = vector.shape_cast %23 : vector<16x128xf32> to vector<1x16x128xf32>
    %25 = vector.extract_strided_slice %24 {offsets = [0, 0, 0], sizes = [1, 1, 128], strides = [1, 1, 1]} : vector<1x16x128xf32> to vector<1x1x128xf32>
    %c0_15 = arith.constant 0 : index
    %c0_16 = arith.constant 0 : index
    %c0_17 = arith.constant 0 : index
    %26 = vector.load %arg5[%c0_15, %c0_16, %c0_17] : memref<1x18x128xf32, #tpu.memory_space<vmem>>, vector<1x1x128xf32>
    tpu.vector_store %arg5[%c0_15, %c0_16, %c0_17], %25 {strides = array<i32>} : memref<1x18x128xf32, #tpu.memory_space<vmem>>, vector<1x1x128xf32>,
    %27 = vector.extract_strided_slice %24 {offsets = [0, 0, 0], sizes = [1, 9, 128], strides = [1, 1, 1]} : vector<1x16x128xf32> to vector<1x9x128xf32>
    %c0_18 = arith.constant 0 : index
    %c1 = arith.constant 1 : index
    %c0_19 = arith.constant 0 : index
    %28 = vector.load %arg5[%c0_18, %c1, %c0_19] : memref<1x18x128xf32, #tpu.memory_space<vmem>>, vector<1x9x128xf32>
    tpu.vector_store %arg5[%c0_18, %c1, %c0_19], %27 {strides = array<i32>} : memref<1x18x128xf32, #tpu.memory_space<vmem>>, vector<1x9x128xf32>,
    %29 = vector.extract_strided_slice %24 {offsets = [0, 8, 0], sizes = [1, 8, 128], strides = [1, 1, 1]} : vector<1x16x128xf32> to vector<1x8x128xf32>
    %c0_20 = arith.constant 0 : index
    %c10 = arith.constant 10 : index
    %c0_21 = arith.constant 0 : index
    %30 = vector.load %arg5[%c0_20, %c10, %c0_21] : memref<1x18x128xf32, #tpu.memory_space<vmem>>, vector<1x8x128xf32>
    tpu.vector_store %arg5[%c0_20, %c10, %c0_21], %29 {strides = array<i32>} : memref<1x18x128xf32, #tpu.memory_space<vmem>>, vector<1x8x128xf32>,
    return
  }
  func.func @transform_0(%arg0: i32) -> (i32, i32, i32) {
    %c0_i32 = arith.constant 0 : i32
    %c0_i32_0 = arith.constant 0 : i32
    %c0_i32_1 = arith.constant 0 : i32
    return %arg0, %c0_i32, %c0_i32_0 : i32, i32, i32
  }
  func.func @transform_1(%arg0: i32) -> (i32, i32, i32) {
    %c0_i32 = arith.constant 0 : i32
    %c0_i32_0 = arith.constant 0 : i32
    %c0_i32_1 = arith.constant 0 : i32
    %c0_i32_2 = arith.constant 0 : i32
    return %c0_i32, %c0_i32_0, %c0_i32_1 : i32, i32, i32
  }
  func.func @transform_2(%arg0: i32) -> (i32, i32, i32) {
    %c0_i32 = arith.constant 0 : i32
    %c0_i32_0 = arith.constant 0 : i32
    %c0_i32_1 = arith.constant 0 : i32
    %c0_i32_2 = arith.constant 0 : i32
    return %c0_i32, %c0_i32_0, %c0_i32_1 : i32, i32, i32
  }
  func.func @transform_3(%arg0: i32) -> (i32, i32) {
    %c0_i32 = arith.constant 0 : i32
    %c0_i32_0 = arith.constant 0 : i32
    %c0_i32_1 = arith.constant 0 : i32
    return %c0_i32, %c0_i32_0 : i32, i32
  }
  func.func @transform_4(%arg0: i32) -> (i32, i32, i32) {
    %c0_i32 = arith.constant 0 : i32
    %c0_i32_0 = arith.constant 0 : i32
    %c0_i32_1 = arith.constant 0 : i32
    return %arg0, %c0_i32, %c0_i32_0 : i32, i32, i32
  }
}

</mosaic_0001>

<llo_original>
// kernel: cross_entropy_projection.1
$region0: #{cross_entropy_projection.1}
  #allocation0 [shape = 'u32[]', space=smem, size = 0x4, offset = 0x4, fixed_abs, tag = 'smem constant byte address 0x4 - core index']
  #allocation1 [shape = 'u32[144,128]{1,0:T(1,128)}', space=vmem, size = 0x12000, scoped, tag = 'internal scratch']
  %s0 = inlined_call_operand.hbm [shape: f32[2,16,64], index: 0, kind: input, shape index: {}]
  %s1 = inlined_call_operand.hbm [shape: f32[1,16,64], index: 1, kind: input, shape index: {}]
  %s2 = inlined_call_operand.hbm [shape: f32[1,16,64], index: 2, kind: input, shape index: {}]
  %s3 = inlined_call_operand.hbm [shape: f32[64,128], index: 3, kind: input, shape index: {}]
  %s4 = inlined_call_operand.vmem [shape: f32[2,18,128], index: 4, kind: output, shape index: {}]
  %s5 = sld [smem:[#allocation0]]
  $region65: #{cross_entropy_projection.1} parent=0
    _
  %s7 = ssub.s32 1, %s5
  %s8 = scalar_select 0, %s7, %s5
  $region1: #{cross_entropy_projection.1} parent=0
    #allocation2 [shape = 'u8[16384]{0}', space=vmem, size = 0x4000, scoped, tag = 'input window, operand 0']
    #allocation3 [shape = 's32[2]{0}', space=sflag, size = 0x8, scoped, tag = 'scoped memory for cross_entropy_projection.1']
    #allocation4 [shape = 'u8[8192]{0}', space=vmem, size = 0x2000, scoped, tag = 'input window, operand 1, single buffered']
    #allocation5 [shape = 's32[1]{0}', space=sflag, size = 0x4, scoped, tag = 'scoped memory for cross_entropy_projection.1']
    #allocation6 [shape = 'u8[8192]{0}', space=vmem, size = 0x2000, scoped, tag = 'input window, operand 2, single buffered']
    #allocation7 [shape = 'u8[32768]{0}', space=vmem, size = 0x8000, scoped, tag = 'input window, operand 3, single buffered']
    #allocation8 [shape = 's32[1]{0}', space=sflag, size = 0x4, scoped, tag = 'scoped memory for cross_entropy_projection.1']
    %9 = vsyncpa [#allocation3], 0
    %s10 = scalar_lea.sflag [#allocation3], 1
    %11 = vsyncpa %s10, 0
    %12 = vsyncpa [#allocation5], 0
    %13 = vsyncpa [#allocation8], 0
    loop: start=0, step=1, limit=4
    $region2: #{cross_entropy_projection.1} parent=1 // loop_pre_header
      _
    $region3: #{cross_entropy_projection.1} parent=1 // loop_header
      %s15 = sphi 0, %s19
      %p16 = scmp.ge.s32.totalorder %s15, 4
      %s25 = sphi 0, %s27
      %s28 = sphi 0, %s25
      %s29 = sphi 0, %s28
      %s45 = sphi 0, %s29
      %s49 = sphi 0, %s49
      %s51 = sphi 0, %s49
      %s52 = sphi 0, %s51
      %s66 = sphi 0, %s52
      %s70 = sphi 0, %s70
      %s72 = sphi 0, %s70
      %s73 = sphi 0, %s72
      %s87 = sphi 0, %s73
      %s91 = sphi 0, %s91
      %s93 = sphi 0, %s91
      %s94 = sphi 0, %s93
      %s108 = sphi 0, %s94
      %s114 = sphi 0, %s116
      %s117 = sphi 0, %s114
      %s118 = sphi 0, %s117
      %s134 = sphi 0, %s118
    $region4: #{cross_entropy_projection.1} parent=1 // loop_header_branch
      %18 = sbr.rel (%p16) target = $region8
    $region5: #{cross_entropy_projection.1} parent=1 // loop_body
      %s20 = ssub.s32 %s15, 1
      %s21 = ssub.s32 %s15, 2
      %s22 = sadd.s32 %s15, 1
      %s23 = ssub.s32 %s15, %s22
      %p24 = scmp.eq.s32.totalorder %s23, 0
      %s26 = sadd.s32 %s25, 1
      %s27 = scalar_select %p24, %s25, %s26
      %p30 = pneg %p24
      %p31 = scmp.eq.s32.totalorder %s15, 1
      %p32 = por %p30, %p31
      %p33 = scmp.ne.s32.totalorder %s25, %s28
      %p34 = scmp.eq.s32.totalorder %s15, 0
      %p35 = por %p33, %p34
      %p36 = scmp.ne.s32.totalorder %s25, %s28
      %p37 = scmp.eq.s32.totalorder %s20, 1
      %p38 = por %p36, %p37
      %p39 = scmp.ne.s32.totalorder %s28, %s29
      %p40 = scmp.eq.s32.totalorder %s20, 0
      %p41 = por %p39, %p40
      %p42 = scmp.ne.s32.totalorder %s28, %s29
      %p43 = scmp.eq.s32.totalorder %s21, 1
      %p44 = por %p42, %p43
      %p46 = scmp.ne.s32.totalorder %s29, %s45
      %p47 = scmp.eq.s32.totalorder %s21, 0
      %p48 = por %p46, %p47
      %s50 = sadd.s32 %s49, 1
      %p53 = scmp.eq.s32.totalorder %s15, 1
      %p54 = scmp.ne.s32.totalorder %s49, %s51
      %p55 = scmp.eq.s32.totalorder %s15, 0
      %p56 = por %p54, %p55
      %p57 = scmp.ne.s32.totalorder %s49, %s51
      %p58 = scmp.eq.s32.totalorder %s20, 1
      %p59 = por %p57, %p58
      %p60 = scmp.ne.s32.totalorder %s51, %s52
      %p61 = scmp.eq.s32.totalorder %s20, 0
      %p62 = por %p60, %p61
      %p63 = scmp.ne.s32.totalorder %s51, %s52
      %p64 = scmp.eq.s32.totalorder %s21, 1
      %p65 = por %p63, %p64
      %p67 = scmp.ne.s32.totalorder %s52, %s66
      %p68 = scmp.eq.s32.totalorder %s21, 0
      %p69 = por %p67, %p68
      %s71 = sadd.s32 %s70, 1
      %p74 = scmp.eq.s32.totalorder %s15, 1
      %p75 = scmp.ne.s32.totalorder %s70, %s72
      %p76 = scmp.eq.s32.totalorder %s15, 0
      %p77 = por %p75, %p76
      %p78 = scmp.ne.s32.totalorder %s70, %s72
      %p79 = scmp.eq.s32.totalorder %s20, 1
      %p80 = por %p78, %p79
      %p81 = scmp.ne.s32.totalorder %s72, %s73
      %p82 = scmp.eq.s32.totalorder %s20, 0
      %p83 = por %p81, %p82
      %p84 = scmp.ne.s32.totalorder %s72, %s73
      %p85 = scmp.eq.s32.totalorder %s21, 1
      %p86 = por %p84, %p85
      %p88 = scmp.ne.s32.totalorder %s73, %s87
      %p89 = scmp.eq.s32.totalorder %s21, 0
      %p90 = por %p88, %p89
      %s92 = sadd.s32 %s91, 1
      %p95 = scmp.eq.s32.totalorder %s15, 1
      %p96 = scmp.ne.s32.totalorder %s91, %s93
      %p97 = scmp.eq.s32.totalorder %s15, 0
      %p98 = por %p96, %p97
      %p99 = scmp.ne.s32.totalorder %s91, %s93
      %p100 = scmp.eq.s32.totalorder %s20, 1
      %p101 = por %p99, %p100
      %p102 = scmp.ne.s32.totalorder %s93, %s94
      %p103 = scmp.eq.s32.totalorder %s20, 0
      %p104 = por %p102, %p103
      %p105 = scmp.ne.s32.totalorder %s93, %s94
      %p106 = scmp.eq.s32.totalorder %s21, 1
      %p107 = por %p105, %p106
      %p109 = scmp.ne.s32.totalorder %s94, %s108
      %p110 = scmp.eq.s32.totalorder %s21, 0
      %p111 = por %p109, %p110
      %s112 = ssub.s32 %s15, %s22
      %p113 = scmp.eq.s32.totalorder %s112, 0
      %s115 = sadd.s32 %s114, 1
      %s116 = scalar_select %p113, %s114, %s115
      %p119 = pneg %p113
      %p120 = scmp.eq.s32.totalorder %s15, 1
      %p121 = por %p119, %p120
      %p122 = scmp.ne.s32.totalorder %s114, %s117
      %p123 = scmp.eq.s32.totalorder %s15, 0
      %p124 = por %p122, %p123
      %p125 = scmp.ne.s32.totalorder %s114, %s117
      %p126 = scmp.eq.s32.totalorder %s20, 1
      %p127 = por %p125, %p126
      %p128 = scmp.ne.s32.totalorder %s117, %s118
      %p129 = scmp.eq.s32.totalorder %s20, 0
      %p130 = por %p128, %p129
      %p131 = scmp.ne.s32.totalorder %s117, %s118
      %p132 = scmp.eq.s32.totalorder %s21, 1
      %p133 = por %p131, %p132
      %p135 = scmp.ne.s32.totalorder %s118, %s134
      %p136 = scmp.eq.s32.totalorder %s21, 0
      %p137 = por %p135, %p136
      %p138 = scmp.le.s32.totalorder 1, %s15
      %p139 = scmp.lt.s32.totalorder %s15, 3
      %p140 = pnand %p138, %p139
      %p141 = pneg %p140
      // Predicated region
      $region9: #{cross_entropy_projection.1} parent=5 // pred_check
        _
      $region10: #{cross_entropy_projection.1} parent=5 // pred_check_branch
        %143 = sbr.rel (%p140) target = $region12
      $region11: #{cross_entropy_projection.1} parent=5 // pred_region
        %s144 = ssub.s32 %s15, 1
        // Predicated region
        $region13: #{cross_entropy_projection.1} parent=11 // pred_check
          %p145 = pneg %p62
        $region14: #{cross_entropy_projection.1} parent=11 // pred_check_branch
          %147 = sbr.rel (%p145) target = $region16
        $region15: #{cross_entropy_projection.1} parent=11 // pred_region
          %s149 = ssub.s32 256, 256
          %150 = vsyncadd [#allocation5], %s149
          %s151 = sshll.u32 [#allocation4], 4
          %s152 = int_to_ptr.vmem [resolvable:$true] %s151
          %157 = dma.hbm_to_vmem [thread:$0]  %s1, 256, %s152, [#allocation5], 128, 128, 8
        $region16: #{cross_entropy_projection.1} parent=11 // pred_fallthru
          _
        // Predicated region
        $region17: #{cross_entropy_projection.1} parent=11 // pred_check
          %p158 = pneg %p83
        $region18: #{cross_entropy_projection.1} parent=11 // pred_check_branch
          %160 = sbr.rel (%p158) target = $region20
        $region19: #{cross_entropy_projection.1} parent=11 // pred_region
          %s162 = ssub.s32 256, 256
          %163 = vsyncadd [#allocation5], %s162
          %s164 = sshll.u32 [#allocation6], 4
          %s165 = int_to_ptr.vmem [resolvable:$true] %s164
          %170 = dma.hbm_to_vmem [thread:$0]  %s2, 256, %s165, [#allocation5], 128, 128, 8
        $region20: #{cross_entropy_projection.1} parent=11 // pred_fallthru
          _
        // Predicated region
        $region21: #{cross_entropy_projection.1} parent=11 // pred_check
          %p171 = pneg %p104
        $region22: #{cross_entropy_projection.1} parent=11 // pred_check_branch
          %173 = sbr.rel (%p171) target = $region24
        $region23: #{cross_entropy_projection.1} parent=11 // pred_region
          %s175 = ssub.s32 1024, 1024
          %176 = vsyncadd [#allocation8], %s175
          %s177 = sshll.u32 [#allocation7], 4
          %s178 = int_to_ptr.vmem [resolvable:$true] %s177
          %183 = dma.hbm_to_vmem [thread:$0]  %s3, 1024, %s178, [#allocation8], 128, 128, 8
        $region24: #{cross_entropy_projection.1} parent=11 // pred_fallthru
          _
      $region12: #{cross_entropy_projection.1} parent=5 // pred_fallthru
        _
      %p184 = scmp.lt.s32.totalorder %s15, 2
      // Predicated region
      $region25: #{cross_entropy_projection.1} parent=5 // pred_check
        %p185 = pneg %p184
      $region26: #{cross_entropy_projection.1} parent=5 // pred_check_branch
        %187 = sbr.rel (%p185) target = $region28
      $region27: #{cross_entropy_projection.1} parent=5 // pred_region
        // Predicated region
        $region29: #{cross_entropy_projection.1} parent=27 // pred_check
          %p188 = pneg %p35
        $region30: #{cross_entropy_projection.1} parent=27 // pred_check_branch
          %190 = sbr.rel (%p188) target = $region32
        $region31: #{cross_entropy_projection.1} parent=27 // pred_region
          %s191 = sand.u32 %s25, 1
          %s192 = scalar_lea.sflag [#allocation3], %s191
          %s193 = sand.u32 %s25, 1
          %s194 = smul.addr %s193, 16
          %s195 = scalar_lea.vmem [#allocation2], %s194
          %s197 = ssub.s32 256, 256
          %198 = vsyncadd %s192, %s197
          %s199 = smul.addr %s15, 2
          %s200 = smul.addr %s199, 128
          %s201 = scalar_lea.hbm %s0, %s200
          %s202 = sshll.u32 %s195, 4
          %s203 = int_to_ptr.vmem [resolvable:$true] %s202
          %208 = dma.hbm_to_vmem [thread:$0]  %s201, 256, %s203, %s192, 128, 128, 8
        $region32: #{cross_entropy_projection.1} parent=27 // pred_fallthru
          _
      $region28: #{cross_entropy_projection.1} parent=5 // pred_fallthru
        _
      %p209 = scmp.le.s32.totalorder 1, %s15
      %p210 = scmp.lt.s32.totalorder %s15, 3
      %p211 = pnand %p209, %p210
      %p212 = pneg %p211
      // Predicated region
      $region33: #{cross_entropy_projection.1} parent=5 // pred_check
        _
      $region34: #{cross_entropy_projection.1} parent=5 // pred_check_branch
        %214 = sbr.rel (%p211) target = $region36
      $region35: #{cross_entropy_projection.1} parent=5 // pred_region
        %s215 = ssub.s32 %s15, 1
        %s216 = sand.u32 %s28, 1
        %s217 = scalar_lea.sflag [#allocation3], %s216
        %s218 = sand.u32 %s28, 1
        %s219 = smul.addr %s218, 16
        %s220 = scalar_lea.vmem [#allocation2], %s219
        // Predicated region
        $region37: #{cross_entropy_projection.1} parent=35 // pred_check
          %p221 = pneg %p41
        $region38: #{cross_entropy_projection.1} parent=35 // pred_check_branch
          %223 = sbr.rel (%p221) target = $region40
        $region39: #{cross_entropy_projection.1} parent=35 // pred_region
          %224 = dma.done %s217, 256
        $region40: #{cross_entropy_projection.1} parent=35 // pred_fallthru
          _
        // Predicated region
        $region41: #{cross_entropy_projection.1} parent=35 // pred_check
          %p225 = pneg %p62
        $region42: #{cross_entropy_projection.1} parent=35 // pred_check_branch
          %227 = sbr.rel (%p225) target = $region44
        $region43: #{cross_entropy_projection.1} parent=35 // pred_region
          %228 = dma.done [#allocation5], 256
        $region44: #{cross_entropy_projection.1} parent=35 // pred_fallthru
          _
        // Predicated region
        $region45: #{cross_entropy_projection.1} parent=35 // pred_check
          %p229 = pneg %p83
        $region46: #{cross_entropy_projection.1} parent=35 // pred_check_branch
          %231 = sbr.rel (%p229) target = $region48
        $region47: #{cross_entropy_projection.1} parent=35 // pred_region
          %232 = dma.done [#allocation5], 256
        $region48: #{cross_entropy_projection.1} parent=35 // pred_fallthru
          _
        // Predicated region
        $region49: #{cross_entropy_projection.1} parent=35 // pred_check
          %p233 = pneg %p104
        $region50: #{cross_entropy_projection.1} parent=35 // pred_check_branch
          %235 = sbr.rel (%p233) target = $region52
        $region51: #{cross_entropy_projection.1} parent=35 // pred_region
          %236 = dma.done [#allocation8], 1024
        $region52: #{cross_entropy_projection.1} parent=35 // pred_fallthru
          _
        %s237 = sand.u32 %s28, 1
        %s238 = scalar_lea.sflag [#allocation3], %s237
        %s239 = sand.u32 %s28, 1
        %s240 = smul.addr %s239, 16
        %s241 = scalar_lea.vmem [#allocation2], %s240
        %p242 = pneg %p41
        %p243 = pneg %p38
        %p244 = pneg %p62
        %p245 = pneg %p59
        %p246 = pneg %p83
        %p247 = pneg %p80
        %p248 = pneg %p104
        %p249 = pneg %p101
        %p250 = pneg %p130
        %p251 = pneg %p127
        %p252 = scmp.lt.s32.totalorder %s20, 1
        %s253 = scalar_select %p252, %s20, 1
        %s254 = smul.addr %s253, 3
        %s255 = smul.addr %s254, 8
        %s256 = scalar_lea.vmem %s4, %s255
        %p257 = scmp.lt.s32.totalorder %s20, 1
        %s258 = scalar_select %p257, %s20, 1
        %s259 = smul.addr %s258, 3
        %s260 = smul.addr %s259, 8
        %s261 = scalar_lea.vmem %s4, %s260
        %v262 = vld [vmem:[%s220] sm:$0xff]
        %v263 = vld [vmem:[%s220 + $0x8] sm:$0xff]
        %vm264 = vcmask 523264
        %v265 = vsel %vm264, %v262, 0.0
        %v266 = vsel %vm264, %v263, 0.0
        %v267 = vadd.f32 %v265, %v266
        %v268 = vrot.slane %v267, 4
        %v269 = vadd.f32 %v267, %v268
        %v270 = vrot.slane %v269, 2
        %v271 = vadd.f32 %v269, %v270
        %v272 = vrot.slane %v271, 1
        %v273 = vadd.f32 %v271, %v272
        %v274 = vrcp.pop 16.0
        %v275 = vmul.f32 %v273, %v274
        %v276 = vsub.f32 %v262, %v275
        %v277 = vsub.f32 %v263, %v275
        %v278 = vmul.f32 %v276, %v276
        %v279 = vmul.f32 %v277, %v277
        %v280 = vsel %vm264, %v278, 0.0
        %v281 = vsel %vm264, %v279, 0.0
        %v282 = vadd.f32 %v280, %v281
        %v283 = vrot.slane %v282, 4
        %v284 = vadd.f32 %v282, %v283
        %v285 = vrot.slane %v284, 2
        %v286 = vadd.f32 %v284, %v285
        %v287 = vrot.slane %v286, 1
        %v288 = vadd.f32 %v286, %v287
        %v289 = vmul.f32 %v288, %v274
        %v290 = vadd.f32 %v289, 1e-05
        %v291 = vrsqrt.pop %v290
        %v292 = vmul.f32 %v276, %v291
        %v293 = vmul.f32 %v277, %v291
        %v294 = vld [vmem:[#allocation4] sm:$0xff]
        %v295 = vld [vmem:[#allocation4 + $0x8] sm:$0xff]
        %v296 = vmul.f32 %v292, %v294
        %v297 = vmul.f32 %v293, %v295
        %v298 = vld [vmem:[#allocation6] sm:$0xff]
        %v299 = vld [vmem:[#allocation6 + $0x8] sm:$0xff]
        %v300 = vadd.f32 %v296, %v298
        %v301 = vadd.f32 %v297, %v299
        %v302 = vld [vmem:[#allocation7] sm:$0xff]
        %v303 = vld [vmem:[#allocation7 + $0x8] sm:$0xff]
        %v304 = vld [vmem:[#allocation7 + $0x10] sm:$0xff]
        %v305 = vld [vmem:[#allocation7 + $0x18] sm:$0xff]
        %v306 = vld [vmem:[#allocation7 + $0x20] sm:$0xff]
        %v307 = vld [vmem:[#allocation7 + $0x28] sm:$0xff]
        %v308 = vld [vmem:[#allocation7 + $0x30] sm:$0xff]
        %v309 = vld [vmem:[#allocation7 + $0x38] sm:$0xff]
        %v311 = vsel %vm264, %v300, 0
        %v314 = vsel %vm264, %v301, 0
        %316 = vmatprep.subr.mxu0 0.0
        %317 = vmatpush1.msra.mxu0 %v302
        %318 = vmatprep.subr.mxu0 0.0
        %319 = vmatpush1.msra.mxu0 %v303
        %320 = vmatprep.subr.mxu0 0.0
        %321 = vmatpush1.msra.mxu0 %v304
        %322 = vmatprep.subr.mxu0 0.0
        %323 = vmatpush1.msra.mxu0 %v305
        %324 = vmatprep.subr.mxu0 0.0
        %325 = vmatpush1.msra.mxu0 %v306
        %326 = vmatprep.subr.mxu0 0.0
        %327 = vmatpush1.msra.mxu0 %v307
        %328 = vmatprep.subr.mxu0 0.0
        %329 = vmatpush1.msra.mxu0 %v308
        %330 = vmatprep.subr.mxu0 0.0
        %331 = vmatpush1.msra.mxu0 %v309
        %332 = vmatprep.subr.mxu0 0.0
        %333 = vmatpush1.msra.mxu0 0.0
        %334 = vmatprep.subr.mxu0 0.0
        %335 = vmatpush1.msra.mxu0 0.0
        %336 = vmatprep.subr.mxu0 0.0
        %337 = vmatpush1.msra.mxu0 0.0
        %338 = vmatprep.subr.mxu0 0.0
        %339 = vmatpush1.msra.mxu0 0.0
        %340 = vmatprep.subr.mxu0 0.0
        %341 = vmatpush1.msra.mxu0 0.0
        %342 = vmatprep.subr.mxu0 0.0
        %343 = vmatpush1.msra.mxu0 0.0
        %344 = vmatprep.subr.mxu0 0.0
        %345 = vmatpush1.msra.mxu0 0.0
        %346 = vmatprep.subr.mxu0 0.0
        %347 = vmatpush1.msra.mxu0 0.0
        %348 = vmatprep.subr.mxu0 0.0
        %349 = vmatpush1.msra.mxu0 0.0
        %350 = vmatprep.subr.mxu0 0.0
        %351 = vmatpush1.msra.mxu0 0.0
        %352 = vmatprep.subr.mxu0 0.0
        %353 = vmatpush1.msra.mxu0 0.0
        %354 = vmatprep.subr.mxu0 0.0
        %355 = vmatpush1.msra.mxu0 0.0
        %356 = vmatprep.subr.mxu0 0.0
        %357 = vmatpush1.msra.mxu0 0.0
        %358 = vmatprep.subr.mxu0 0.0
        %359 = vmatpush1.msra.mxu0 0.0
        %360 = vmatprep.subr.mxu0 0.0
        %361 = vmatpush1.msra.mxu0 0.0
        %362 = vmatprep.subr.mxu0 0.0
        %363 = vmatpush1.msra.mxu0 0.0
        %364 = vmatprep.subr.mxu0 0.0
        %365 = vmatpush1.msra.mxu0 0.0
        %366 = vmatprep.subr.mxu0 0.0
        %367 = vmatpush1.msra.mxu0 0.0
        %368 = vmatprep.subr.mxu0 0.0
        %369 = vmatpush1.msra.mxu0 0.0
        %370 = vmatprep.subr.mxu0 0.0
        %371 = vmatpush1.msra.mxu0 0.0
        %372 = vmatprep.subr.mxu0 0.0
        %373 = vmatpush1.msra.mxu0 0.0
        %374 = vmatprep.subr.mxu0 0.0
        %375 = vmatpush1.msra.mxu0 0.0
        %376 = vmatprep.subr.mxu0 0.0
        %377 = vmatpush1.msra.mxu0 0.0
        %378 = vmatprep.subr.mxu0 0.0
        %379 = vmatpush1.msra.mxu0 0.0
        %380 = vmatprep.mubr.f32.mxu0 0.0
        %381 = vmatmul.mubr.f32.gmra.mrb[0].mxu0 %v311
        %v382 = vpop.f32.mrb[0].mxu0
        %v383 = vadd.f32 0.0, %v382
        %v384 = vpop.f32.mrb[0].mxu0
        %385 = vmatprep.mubr.f32.mxu0 0.0
        %386 = vmatmul.mubr.f32.gmra.mrb[0].mxu0 %v314
        %v387 = vpop.f32.mrb[0].mxu0
        %v388 = vadd.f32 0.0, %v387
        %v389 = vpop.f32.mrb[0].mxu0
        %390 = vdwg.mxu0
        %391 = vst [vmem:[%s261] sm:$0x1] %v383
        %392 = vst [vmem:[%s261 + $0x1] sm:$0xff] %v383
        %393 = vst [vmem:[%s261 + $0x9] sm:$0x1] %v388
        %394 = vst [vmem:[%s261 + $0xa] sm:$0xff] %v388
        %p395 = scmp.lt.s32.totalorder %s20, 1
        %s396 = scalar_select %p395, %s20, 1
        %s397 = smul.addr %s396, 3
        %s398 = smul.addr %s397, 8
        %s399 = scalar_lea.vmem %s4, %s398
        // Predicated region
        $region53: #{cross_entropy_projection.1} parent=35 // pred_check
          %p400 = pneg %p127
        $region54: #{cross_entropy_projection.1} parent=35 // pred_check_branch
          %402 = sbr.rel (%p400) target = $region56
        $region55: #{cross_entropy_projection.1} parent=35 // pred_region
          _
        $region56: #{cross_entropy_projection.1} parent=35 // pred_fallthru
          _
      $region36: #{cross_entropy_projection.1} parent=5 // pred_fallthru
        _
      %p403 = scmp.le.s32.totalorder 2, %s15
      // Predicated region
      $region57: #{cross_entropy_projection.1} parent=5 // pred_check
        %p404 = pneg %p403
      $region58: #{cross_entropy_projection.1} parent=5 // pred_check_branch
        %406 = sbr.rel (%p404) target = $region60
      $region59: #{cross_entropy_projection.1} parent=5 // pred_region
        %s407 = ssub.s32 %s15, 2
        // Predicated region
        $region61: #{cross_entropy_projection.1} parent=59 // pred_check
          %p408 = pneg %p133
        $region62: #{cross_entropy_projection.1} parent=59 // pred_check_branch
          %410 = sbr.rel (%p408) target = $region64
        $region63: #{cross_entropy_projection.1} parent=59 // pred_region
          %p411 = scmp.lt.s32.totalorder %s21, 1
          %s412 = scalar_select %p411, %s21, 1
          %s413 = smul.addr %s412, 3
          %s414 = smul.addr %s413, 8
          %s415 = scalar_lea.vmem %s4, %s414
        $region64: #{cross_entropy_projection.1} parent=59 // pred_fallthru
          _
      $region60: #{cross_entropy_projection.1} parent=5 // pred_fallthru
        _
    $region6: #{cross_entropy_projection.1} parent=1 // loop_footer
      %s19 = sadd.s32 1, %s15
    $region7: #{cross_entropy_projection.1} parent=1 // loop_footer_branch
      %14 = sbr.rel target = $region3
    $region8: #{cross_entropy_projection.1} parent=1 // loop_exit
      _
    %416 = vsyncpa [#allocation3], 1
    %s417 = scalar_lea.sflag [#allocation3], 1
    %418 = vsyncpa %s417, 1
    %419 = vsyncpa [#allocation5], 1
    %420 = vsyncpa [#allocation8], 1

</llo_original>
